<compile_context>
chip_gen: v6e
topology: v6e:2x2x1
jax: 0.10.0
libtpu: 0.0.40
codegen_flags: <defaults>
</compile_context>

<pallas_src>
import jax
import jax.numpy as jnp
from jax.experimental import pallas as pl
from jax.experimental.pallas import tpu as pltpu

# ----------------------------- constants ------------------------------------
NUM_ATOMIC_SYMBOLS = 16   # len(ATOMIC_SYMBOL) (synthetic vocab)
NUM_BOND_TYPES = 4        # len(BONDTYPE)

INPUT_DIM = 16
HIDDEN_DIMS = [32]
OUTPUT_DIM = 16

NUM_NODES = 16            # multiple of 8 (sublane-friendly)
NUM_EDGES = 24
BATCH = 2                 # independent graphs per kernel call

DIMS = [INPUT_DIM] + HIDDEN_DIMS + [OUTPUT_DIM]


def _round_up(x, m):
    return ((x + m - 1) // m) * m


# ------------------------- static weight-packing layout ----------------------
def compute_weight_layout(dims, num_relations):
    """Row offsets (8-aligned) of each layer's stacked weight & bias inside the
    single packed f32 weight buffer.  Returns (layout, total_rows, lane_w) with
    layout[l] = (w_row, b_row, din, dout)."""
    layout = []
    row = 0
    for l in range(len(dims) - 1):
        din, dout = dims[l], dims[l + 1]
        w_row = row                                   # multiple of 8
        b_row = w_row + (num_relations + 1) * din     # multiple of 8 (din % 8 == 0)
        row = _round_up(b_row + 1, 8)
        layout.append((w_row, b_row, din, dout))
    total_rows = _round_up(row, 8)
    lane_w = max(dims[1:])
    return layout, total_rows, lane_w


W_LAYOUT, W_ROWS, W_LANES = compute_weight_layout(DIMS, NUM_BOND_TYPES)


def pack_weights(layers, layout, total_rows, lane_w, num_relations):
    """Pack all stacked relation weights, root weights and biases into ONE
    (total_rows, lane_w) f32 buffer.  Done once at init (off the per-call
    critical path)."""
    buf = jnp.zeros((total_rows, lane_w), jnp.float32)
    for layer, (w_row, b_row, din, dout) in zip(layers, layout):
        # Stacked contraction weight: [W_rel[0]; ...; W_rel[R-1]; W_root]
        w_stacked = jnp.concatenate(
            [layer["w_rel"].astype(jnp.float32).reshape(num_relations * din, dout),
             layer["w_root"].astype(jnp.float32)],
            axis=0)                                   # ((R+1)*din, dout)
        buf = buf.at[w_row:w_row + (num_relations + 1) * din, :dout].set(w_stacked)
        buf = buf.at[b_row, :dout].set(layer["bias"].astype(jnp.float32))
    return buf


# ----------------------------- Pallas kernel --------------------------------
def _make_fused_rgcn_kernel(layout, num_relations, num_nodes, din0):
    """Kernel for one graph (one grid step): all RGCN layers fused,
    aggregate-then-transform ordering, one deep matmul per layer."""
    R, N = num_relations, num_nodes

    def kernel(xadj_ref, w_ref, o_ref, *z_refs):
        # xadj_ref: (1, R*N + N, lanes)  rows [0,R*N): normalized adjacency
        #                                rows [R*N,R*N+N): node features
        # w_ref:    (rows, lane_w)       packed stacked weights + biases
        # o_ref:    (1, N, dout_last)
        # z_refs:   per-layer VMEM scratch (N, (R+1)*din_l)

        # Hoist once: static, sublane-aligned REF slices -> plain vlds, reused
        # by both layers (no re-indexing, no value lane/sublane shuffles).
        adjs = [xadj_ref[0, r * N:(r + 1) * N, 0:N] for r in range(R)]
        h = xadj_ref[0, R * N:R * N + N, 0:din0]

        for l, (w_row, b_row, din, dout) in enumerate(layout):
            z = z_refs[l]
            # Aggregate-then-transform: Z_r = adj_r @ h written into lane slot
            # r of the scratch (static lane-offset stores = address math).
            for r in range(R):
                z[:, r * din:(r + 1) * din] = jnp.dot(
                    adjs[r], h, preferred_element_type=jnp.float32)
            z[:, R * din:(R + 1) * din] = h
            # ONE deep-contraction matmul: (N,(R+1)*din) @ ((R+1)*din,dout).
            w_l = w_ref[w_row:w_row + (R + 1) * din, 0:dout]
            b_l = w_ref[b_row:b_row + 1, 0:dout]
            h = jnp.dot(z[...], w_l, preferred_element_type=jnp.float32) + b_l
            # `data = self.act(x)` discards the activation in the reference;
            # dropout p=0.0 is identity -> layer output is raw RGCNConv out.

        o_ref[0] = h.astype(o_ref.dtype)

    return kernel


def rgcn_fused(xadj, w_packed):
    """Run all RGCN layers for a BATCH of graphs in one pallas_call.

    xadj:     (B, R*N + N, lanes) f32  per-graph packed [adjacency ; features]
    w_packed: (W_ROWS, W_LANES)   f32  packed stacked weights + biases
    returns   (B, N, D_last)      f32
    """
    B, rows, lanes = xadj.shape
    N, R = NUM_NODES, NUM_BOND_TYPES
    dout_last = DIMS[-1]

    kernel = _make_fused_rgcn_kernel(W_LAYOUT, R, N, DIMS[0])
    scratch = [pltpu.VMEM((N, (R + 1) * din), jnp.float32)
               for (_, _, din, _) in W_LAYOUT]

    return pl.pallas_call(
        kernel,
        out_shape=jax.ShapeDtypeStruct((B, N, dout_last), jnp.float32),
        grid_spec=pltpu.PrefetchScalarGridSpec(
            num_scalar_prefetch=0,
            grid=(B,),                                    # one graph per step
            in_specs=[
                pl.BlockSpec((1, rows, lanes), lambda b: (b, 0, 0)),
                pl.BlockSpec(w_packed.shape, lambda b: (0, 0)),  # resident
            ],
            out_specs=pl.BlockSpec((1, N, dout_last), lambda b: (b, 0, 0)),
            scratch_shapes=scratch),
        compiler_params=pltpu.CompilerParams(
            dimension_semantics=("parallel",)),           # shards over v7x TCs
    )(xadj, w_packed)


# ----------------------------- glue (plain JAX) ------------------------------
def build_packed_graph(h, edge_index, edge_type, num_nodes, num_relations):
    """One (R*N + N, lanes) buffer per graph: relation-major normalized dense
    adjacency (PyG RGCNConv 'mean' aggregation, source_to_target flow) stacked
    above the node features -> a single input DMA for the kernel."""
    # TODO(synk): for latency-critical serving, move this scatter + the
    # embedding gather into the kernel via PrefetchScalarGridSpec (SMEM edge
    # lists) instead of XLA glue.
    N, d0 = num_nodes, h.shape[1]
    lanes = max(N, d0)
    src, dst = edge_index[0], edge_index[1]
    A = jnp.zeros((num_relations * N, N), jnp.float32)
    A = A.at[edge_type * N + dst, src].add(1.0)
    deg = A.sum(axis=1, keepdims=True)
    A = jnp.where(deg > 0, A / jnp.maximum(deg, 1.0), 0.0)
    buf = jnp.zeros((num_relations * N + N, lanes), jnp.float32)
    buf = buf.at[:num_relations * N, :N].set(A)
    buf = buf.at[num_relations * N:, :d0].set(h.astype(jnp.float32))
    return buf


def init_params(key, vocab, dims, num_relations):
    params = {}
    key, k_emb = jax.random.split(key)
    params["emb"] = 0.1 * jax.random.normal(k_emb, (vocab, dims[0]), jnp.float32)
    layers = []
    for i in range(len(dims) - 1):
        din, dout = dims[i], dims[i + 1]
        key, k_rel, k_root, k_b = jax.random.split(key, 4)
        layers.append({
            "w_rel": 0.1 * jax.random.normal(k_rel, (num_relations, din, dout),
                                             jnp.float32),
            "w_root": 0.1 * jax.random.normal(k_root, (din, dout), jnp.float32),
            "bias": 0.1 * jax.random.normal(k_b, (dout,), jnp.float32),
        })
    params["layers"] = layers
    # Pack/stack the weights ONCE here — no per-call transpose/reshape glue.
    params["w_packed"] = pack_weights(layers, W_LAYOUT, W_ROWS, W_LANES,
                                      num_relations)
    return params


@jax.jit
def rgcn_forward(node_ids, edge_index, edge_type, params):
    """Batched forward: node_ids (B,N), edge_index (B,2,E), edge_type (B,E)."""
    h = params["emb"][node_ids]                     # (B, N, D0) embedding gather
    B = node_ids.shape[0]
    xadj = jnp.stack([
        build_packed_graph(h[b], edge_index[b], edge_type[b],
                           NUM_NODES, NUM_BOND_TYPES)
        for b in range(B)
    ], axis=0)                                      # (B, R*N + N, lanes)
    return rgcn_fused(xadj, params["w_packed"])


def rgcn_forward_ref(node_ids, edge_index, edge_type, params):
    """Pure-JAX single-graph reference for correctness check."""
    src, dst = edge_index[0], edge_index[1]
    A = jnp.zeros((NUM_BOND_TYPES, NUM_NODES, NUM_NODES), jnp.float32)
    A = A.at[edge_type, dst, src].add(1.0)
    deg = A.sum(axis=2, keepdims=True)
    adj = jnp.where(deg > 0, A / jnp.maximum(deg, 1.0), 0.0)
    h = params["emb"][node_ids]
    for layer in params["layers"]:
        out = h @ layer["w_root"] + layer["bias"][None, :]
        msg = jnp.einsum("id,rde->rie", h, layer["w_rel"])   # (R, N, Dout)
        out = out + jnp.einsum("rij,rje->ie", adj, msg)
        h = out
    return h


# ----------------------------- main ------------------------------------------
if __name__ == "__main__":
    key = jax.random.PRNGKey(0)
    k_params, k_data = jax.random.split(key)

    params = init_params(k_params, NUM_ATOMIC_SYMBOLS, DIMS, NUM_BOND_TYPES)

    node_ids, edge_indices, edge_types = [], [], []
    kd = k_data
    for _ in range(BATCH):
        kd, k_n, k_s, k_d, k_t = jax.random.split(kd, 5)
        node_ids.append(jax.random.randint(k_n, (NUM_NODES,), 0,
                                           NUM_ATOMIC_SYMBOLS))
        s = jax.random.randint(k_s, (NUM_EDGES,), 0, NUM_NODES)
        d = jax.random.randint(k_d, (NUM_EDGES,), 0, NUM_NODES)
        edge_indices.append(jnp.stack([s, d], axis=0))               # (2, E)
        edge_types.append(jax.random.randint(k_t, (NUM_EDGES,), 0,
                                             NUM_BOND_TYPES))
    node_ids = jnp.stack(node_ids, axis=0)        # (B, N)
    edge_index = jnp.stack(edge_indices, axis=0)  # (B, 2, E)
    edge_type = jnp.stack(edge_types, axis=0)     # (B, E)

    out = jax.block_until_ready(
        rgcn_forward(node_ids, edge_index, edge_type, params))
    assert out.shape == (BATCH, NUM_NODES, OUTPUT_DIM)

    for b in range(BATCH):
        ref = jax.block_until_ready(
            rgcn_forward_ref(node_ids[b], edge_index[b], edge_type[b], params))
        assert jnp.allclose(out[b], ref, atol=1e-4, rtol=1e-4), \
            f"mismatch vs reference (graph {b})"

    print("KERNEL_OK")
</pallas_src>

<mosaic_0001>
module attributes {stable_mosaic.version = 11 : i64} {
  func.func private @main(%arg0: i32) attributes {dimension_semantics = [#tpu.dimension_semantics<core_parallel>], iteration_bounds = array<i64: 2>, tpu.core_type = #tpu.core_type<sc_scalar_subcore>, window_params = []} {
    return
  }
}

module attributes {stable_mosaic.version = 11 : i64} {
  func.func private @main(%arg0: i32) attributes {dimension_semantics = [#tpu.dimension_semantics<core_parallel>], iteration_bounds = array<i64: 2>, tpu.core_type = #tpu.core_type<sc_scalar_subcore>, window_params = []} {
    return
  }
}

module attributes {stable_mosaic.version = 11 : i64} {
  func.func @kernel(%arg0: i32, %arg1: memref<1x80x16xf32, #tpu.memory_space<vmem>>, %arg2: memref<256x32xf32, #tpu.memory_space<vmem>>, %arg3: memref<1x16x16xf32, #tpu.memory_space<vmem>>, %arg4: memref<16x80xf32, #tpu.memory_space<vmem>>, %arg5: memref<16x160xf32, #tpu.memory_space<vmem>>) attributes {dimension_semantics = [#tpu.dimension_semantics<parallel>], iteration_bounds = array<i64: 2>, scalar_prefetch = 0 : i64, scratch_operands = 2 : i64, tpu.core_type = #tpu.core_type<tc>, window_params = [{transform_indices = @transform_0, window_bounds = array<i64: 1, 80, 16>}, {pipeline_mode = #tpu.pipeline_mode<synchronous>, transform_indices = @transform_1, window_bounds = array<i64: 256, 32>}, {transform_indices = @transform_2, window_bounds = array<i64: 1, 16, 16>}]} {
    %c0 = arith.constant 0 : index
    %c0_0 = arith.constant 0 : index
    %c0_1 = arith.constant 0 : index
    %0 = vector.load %arg1[%c0, %c0_0, %c0_1] : memref<1x80x16xf32, #tpu.memory_space<vmem>>, vector<1x16x16xf32>
    %1 = vector.shape_cast %0 : vector<1x16x16xf32> to vector<16x16xf32>
    %c0_2 = arith.constant 0 : index
    %c16 = arith.constant 16 : index
    %c0_3 = arith.constant 0 : index
    %2 = vector.load %arg1[%c0_2, %c16, %c0_3] : memref<1x80x16xf32, #tpu.memory_space<vmem>>, vector<1x16x16xf32>
    %3 = vector.shape_cast %2 : vector<1x16x16xf32> to vector<16x16xf32>
    %c0_4 = arith.constant 0 : index
    %c32 = arith.constant 32 : index
    %c0_5 = arith.constant 0 : index
    %4 = vector.load %arg1[%c0_4, %c32, %c0_5] : memref<1x80x16xf32, #tpu.memory_space<vmem>>, vector<1x16x16xf32>
    %5 = vector.shape_cast %4 : vector<1x16x16xf32> to vector<16x16xf32>
    %c0_6 = arith.constant 0 : index
    %c48 = arith.constant 48 : index
    %c0_7 = arith.constant 0 : index
    %6 = vector.load %arg1[%c0_6, %c48, %c0_7] : memref<1x80x16xf32, #tpu.memory_space<vmem>>, vector<1x16x16xf32>
    %7 = vector.shape_cast %6 : vector<1x16x16xf32> to vector<16x16xf32>
    %c0_8 = arith.constant 0 : index
    %c64 = arith.constant 64 : index
    %c0_9 = arith.constant 0 : index
    %8 = vector.load %arg1[%c0_8, %c64, %c0_9] : memref<1x80x16xf32, #tpu.memory_space<vmem>>, vector<1x16x16xf32>
    %9 = vector.shape_cast %8 : vector<1x16x16xf32> to vector<16x16xf32>
    %cst = arith.constant dense<0.000000e+00> : vector<16x16xf32>
    %10 = tpu.matmul %1, %9, %cst {dimension_numbers = #tpu.dot_dimension_numbers<[1], [0], [0], [1], [0, 0, 1, 1], [], []>} : vector<16x16xf32>, vector<16x16xf32>, vector<16x16xf32> -> vector<16x16xf32>
    %c0_10 = arith.constant 0 : index
    %c0_11 = arith.constant 0 : index
    %11 = vector.load %arg4[%c0_10, %c0_11] : memref<16x80xf32, #tpu.memory_space<vmem>>, vector<16x16xf32>
    tpu.vector_store %arg4[%c0_10, %c0_11], %10 {strides = array<i32>} : memref<16x80xf32, #tpu.memory_space<vmem>>, vector<16x16xf32>,
    %cst_12 = arith.constant dense<0.000000e+00> : vector<16x16xf32>
    %12 = tpu.matmul %3, %9, %cst_12 {dimension_numbers = #tpu.dot_dimension_numbers<[1], [0], [0], [1], [0, 0, 1, 1], [], []>} : vector<16x16xf32>, vector<16x16xf32>, vector<16x16xf32> -> vector<16x16xf32>
    %c0_13 = arith.constant 0 : index
    %c16_14 = arith.constant 16 : index
    %13 = vector.load %arg4[%c0_13, %c16_14] : memref<16x80xf32, #tpu.memory_space<vmem>>, vector<16x16xf32>
    tpu.vector_store %arg4[%c0_13, %c16_14], %12 {strides = array<i32>} : memref<16x80xf32, #tpu.memory_space<vmem>>, vector<16x16xf32>,
    %cst_15 = arith.constant dense<0.000000e+00> : vector<16x16xf32>
    %14 = tpu.matmul %5, %9, %cst_15 {dimension_numbers = #tpu.dot_dimension_numbers<[1], [0], [0], [1], [0, 0, 1, 1], [], []>} : vector<16x16xf32>, vector<16x16xf32>, vector<16x16xf32> -> vector<16x16xf32>
    %c0_16 = arith.constant 0 : index
    %c32_17 = arith.constant 32 : index
    %15 = vector.load %arg4[%c0_16, %c32_17] : memref<16x80xf32, #tpu.memory_space<vmem>>, vector<16x16xf32>
    tpu.vector_store %arg4[%c0_16, %c32_17], %14 {strides = array<i32>} : memref<16x80xf32, #tpu.memory_space<vmem>>, vector<16x16xf32>,
    %cst_18 = arith.constant dense<0.000000e+00> : vector<16x16xf32>
    %16 = tpu.matmul %7, %9, %cst_18 {dimension_numbers = #tpu.dot_dimension_numbers<[1], [0], [0], [1], [0, 0, 1, 1], [], []>} : vector<16x16xf32>, vector<16x16xf32>, vector<16x16xf32> -> vector<16x16xf32>
    %c0_19 = arith.constant 0 : index
    %c48_20 = arith.constant 48 : index
    %17 = vector.load %arg4[%c0_19, %c48_20] : memref<16x80xf32, #tpu.memory_space<vmem>>, vector<16x16xf32>
    tpu.vector_store %arg4[%c0_19, %c48_20], %16 {strides = array<i32>} : memref<16x80xf32, #tpu.memory_space<vmem>>, vector<16x16xf32>,
    %c0_21 = arith.constant 0 : index
    %c64_22 = arith.constant 64 : index
    %18 = vector.load %arg4[%c0_21, %c64_22] : memref<16x80xf32, #tpu.memory_space<vmem>>, vector<16x16xf32>
    tpu.vector_store %arg4[%c0_21, %c64_22], %9 {strides = array<i32>} : memref<16x80xf32, #tpu.memory_space<vmem>>, vector<16x16xf32>,
    %c0_23 = arith.constant 0 : index
    %c0_24 = arith.constant 0 : index
    %19 = vector.load %arg2[%c0_23, %c0_24] : memref<256x32xf32, #tpu.memory_space<vmem>>, vector<80x32xf32>
    %c80 = arith.constant 80 : index
    %c0_25 = arith.constant 0 : index
    %20 = vector.load %arg2[%c80, %c0_25] : memref<256x32xf32, #tpu.memory_space<vmem>>, vector<1x32xf32>
    %c0_26 = arith.constant 0 : index
    %c0_27 = arith.constant 0 : index
    %21 = vector.load %arg4[%c0_26, %c0_27] : memref<16x80xf32, #tpu.memory_space<vmem>>, vector<16x80xf32>
    %cst_28 = arith.constant dense<0.000000e+00> : vector<16x32xf32>
    %22 = tpu.matmul %21, %19, %cst_28 {dimension_numbers = #tpu.dot_dimension_numbers<[1], [0], [0], [1], [0, 0, 1, 1], [], []>} : vector<16x80xf32>, vector<80x32xf32>, vector<16x32xf32> -> vector<16x32xf32>
    %23 = vector.broadcast %20 : vector<1x32xf32> to vector<16x32xf32>
    %24 = arith.addf %22, %23 : vector<16x32xf32>
    %cst_29 = arith.constant dense<0.000000e+00> : vector<16x32xf32>
    %25 = tpu.matmul %1, %24, %cst_29 {dimension_numbers = #tpu.dot_dimension_numbers<[1], [0], [0], [1], [0, 0, 1, 1], [], []>} : vector<16x16xf32>, vector<16x32xf32>, vector<16x32xf32> -> vector<16x32xf32>
    %c0_30 = arith.constant 0 : index
    %c0_31 = arith.constant 0 : index
    %26 = vector.load %arg5[%c0_30, %c0_31] : memref<16x160xf32, #tpu.memory_space<vmem>>, vector<16x32xf32>
    tpu.vector_store %arg5[%c0_30, %c0_31], %25 {strides = array<i32>} : memref<16x160xf32, #tpu.memory_space<vmem>>, vector<16x32xf32>,
    %cst_32 = arith.constant dense<0.000000e+00> : vector<16x32xf32>
    %27 = tpu.matmul %3, %24, %cst_32 {dimension_numbers = #tpu.dot_dimension_numbers<[1], [0], [0], [1], [0, 0, 1, 1], [], []>} : vector<16x16xf32>, vector<16x32xf32>, vector<16x32xf32> -> vector<16x32xf32>
    %c0_33 = arith.constant 0 : index
    %c32_34 = arith.constant 32 : index
    %28 = vector.load %arg5[%c0_33, %c32_34] : memref<16x160xf32, #tpu.memory_space<vmem>>, vector<16x32xf32>
    tpu.vector_store %arg5[%c0_33, %c32_34], %27 {strides = array<i32>} : memref<16x160xf32, #tpu.memory_space<vmem>>, vector<16x32xf32>,
    %cst_35 = arith.constant dense<0.000000e+00> : vector<16x32xf32>
    %29 = tpu.matmul %5, %24, %cst_35 {dimension_numbers = #tpu.dot_dimension_numbers<[1], [0], [0], [1], [0, 0, 1, 1], [], []>} : vector<16x16xf32>, vector<16x32xf32>, vector<16x32xf32> -> vector<16x32xf32>
    %c0_36 = arith.constant 0 : index
    %c64_37 = arith.constant 64 : index
    %30 = vector.load %arg5[%c0_36, %c64_37] : memref<16x160xf32, #tpu.memory_space<vmem>>, vector<16x32xf32>
    tpu.vector_store %arg5[%c0_36, %c64_37], %29 {strides = array<i32>} : memref<16x160xf32, #tpu.memory_space<vmem>>, vector<16x32xf32>,
    %cst_38 = arith.constant dense<0.000000e+00> : vector<16x32xf32>
    %31 = tpu.matmul %7, %24, %cst_38 {dimension_numbers = #tpu.dot_dimension_numbers<[1], [0], [0], [1], [0, 0, 1, 1], [], []>} : vector<16x16xf32>, vector<16x32xf32>, vector<16x32xf32> -> vector<16x32xf32>
    %c0_39 = arith.constant 0 : index
    %c96 = arith.constant 96 : index
    %32 = vector.load %arg5[%c0_39, %c96] : memref<16x160xf32, #tpu.memory_space<vmem>>, vector<16x32xf32>
    tpu.vector_store %arg5[%c0_39, %c96], %31 {strides = array<i32>} : memref<16x160xf32, #tpu.memory_space<vmem>>, vector<16x32xf32>,
    %c0_40 = arith.constant 0 : index
    %c128 = arith.constant 128 : index
    %33 = vector.load %arg5[%c0_40, %c128] : memref<16x160xf32, #tpu.memory_space<vmem>>, vector<16x32xf32>
    tpu.vector_store %arg5[%c0_40, %c128], %24 {strides = array<i32>} : memref<16x160xf32, #tpu.memory_space<vmem>>, vector<16x32xf32>,
    %c88 = arith.constant 88 : index
    %c0_41 = arith.constant 0 : index
    %34 = vector.load %arg2[%c88, %c0_41] : memref<256x32xf32, #tpu.memory_space<vmem>>, vector<160x16xf32>
    %c248 = arith.constant 248 : index
    %c0_42 = arith.constant 0 : index
    %35 = vector.load %arg2[%c248, %c0_42] : memref<256x32xf32, #tpu.memory_space<vmem>>, vector<1x16xf32>
    %c0_43 = arith.constant 0 : index
    %c0_44 = arith.constant 0 : index
    %36 = vector.load %arg5[%c0_43, %c0_44] : memref<16x160xf32, #tpu.memory_space<vmem>>, vector<16x160xf32>
    %cst_45 = arith.constant dense<0.000000e+00> : vector<16x16xf32>
    %37 = tpu.matmul %36, %34, %cst_45 {dimension_numbers = #tpu.dot_dimension_numbers<[1], [0], [0], [1], [0, 0, 1, 1], [], []>} : vector<16x160xf32>, vector<160x16xf32>, vector<16x16xf32> -> vector<16x16xf32>
    %38 = vector.broadcast %35 : vector<1x16xf32> to vector<16x16xf32>
    %39 = arith.addf %37, %38 : vector<16x16xf32>
    %c0_46 = arith.constant 0 : index
    %c0_47 = arith.constant 0 : index
    %c0_48 = arith.constant 0 : index
    %40 = vector.load %arg3[%c0_46, %c0_47, %c0_48] : memref<1x16x16xf32, #tpu.memory_space<vmem>>, vector<1x16x16xf32>
    %41 = vector.shape_cast %40 : vector<1x16x16xf32> to vector<16x16xf32>
    %42 = vector.shape_cast %39 : vector<16x16xf32> to vector<1x16x16xf32>
    tpu.vector_store %arg3[%c0_46, %c0_47, %c0_48], %42 {strides = array<i32>} : memref<1x16x16xf32, #tpu.memory_space<vmem>>, vector<1x16x16xf32>,
    return
  }
  func.func @transform_0(%arg0: i32) -> (i32, i32, i32) {
    %c0_i32 = arith.constant 0 : i32
    %c0_i32_0 = arith.constant 0 : i32
    %c0_i32_1 = arith.constant 0 : i32
    return %arg0, %c0_i32, %c0_i32_0 : i32, i32, i32
  }
  func.func @transform_1(%arg0: i32) -> (i32, i32) {
    %c0_i32 = arith.constant 0 : i32
    %c0_i32_0 = arith.constant 0 : i32
    %c0_i32_1 = arith.constant 0 : i32
    return %c0_i32, %c0_i32_0 : i32, i32
  }
  func.func @transform_2(%arg0: i32) -> (i32, i32, i32) {
    %c0_i32 = arith.constant 0 : i32
    %c0_i32_0 = arith.constant 0 : i32
    %c0_i32_1 = arith.constant 0 : i32
    return %arg0, %c0_i32, %c0_i32_0 : i32, i32, i32
  }
}

</mosaic_0001>

<llo_original>
// kernel: rgcn_forward.1
$region0: #{rgcn_forward.1}
  #allocation0 [shape = 'u32[]', space=smem, size = 0x4, offset = 0x4, fixed_abs, tag = 'smem constant byte address 0x4 - core index']
  #allocation1 [shape = 'u32[144,128]{1,0:T(1,128)}', space=vmem, size = 0x12000, scoped, tag = 'internal scratch']
  #allocation2 [shape = 'f32[16,80]{1,0:T(8,128)}', space=vmem, size = 0x2000, scoped, tag = 'scratch operand']
  #allocation3 [shape = 'f32[16,160]{1,0:T(8,128)}', space=vmem, size = 0x4000, scoped, tag = 'scratch operand']
  %s0 = inlined_call_operand.vmem [shape: f32[2,80,16], index: 0, kind: input, shape index: {}]
  %s1 = inlined_call_operand.vmem [shape: f32[256,32], index: 1, kind: input, shape index: {}]
  %s2 = inlined_call_operand.hbm [shape: f32[2,16,16], index: 2, kind: output, shape index: {}]
  %s3 = sld [smem:[#allocation0]]
  $region41: #{rgcn_forward.1} parent=0
    _
  %s5 = ssub.s32 1, %s3
  %s6 = scalar_select 0, %s5, %s3
  $region1: #{rgcn_forward.1} parent=0
    #allocation4 [shape = 'u8[16384]{0}', space=vmem, size = 0x4000, scoped, tag = 'output window, operand 0']
    #allocation5 [shape = 's32[2]{0}', space=sflag, size = 0x8, scoped, tag = 'scoped memory for rgcn_forward.1']
    %7 = vsyncpa [#allocation5], 0
    %s8 = scalar_lea.sflag [#allocation5], 1
    %9 = vsyncpa %s8, 0
    loop: start=0, step=1, limit=4
    $region2: #{rgcn_forward.1} parent=1 // loop_pre_header
      _
    $region3: #{rgcn_forward.1} parent=1 // loop_header
      %s11 = sphi 0, %s15
      %p12 = scmp.ge.s32.totalorder %s11, 4
      %s21 = sphi 0, %s23
      %s24 = sphi 0, %s21
      %s25 = sphi 0, %s24
      %s41 = sphi 0, %s25
      %s45 = sphi 0, %s45
      %s47 = sphi 0, %s45
      %s48 = sphi 0, %s47
      %s62 = sphi 0, %s48
      %s68 = sphi 0, %s70
      %s71 = sphi 0, %s68
      %s72 = sphi 0, %s71
      %s88 = sphi 0, %s72
    $region4: #{rgcn_forward.1} parent=1 // loop_header_branch
      %14 = sbr.rel (%p12) target = $region8
    $region5: #{rgcn_forward.1} parent=1 // loop_body
      %s16 = ssub.s32 %s11, 1
      %s17 = ssub.s32 %s11, 2
      %s18 = sadd.s32 %s11, 1
      %s19 = ssub.s32 %s11, %s18
      %p20 = scmp.eq.s32.totalorder %s19, 0
      %s22 = sadd.s32 %s21, 1
      %s23 = scalar_select %p20, %s21, %s22
      %p26 = pneg %p20
      %p27 = scmp.eq.s32.totalorder %s11, 1
      %p28 = por %p26, %p27
      %p29 = scmp.ne.s32.totalorder %s21, %s24
      %p30 = scmp.eq.s32.totalorder %s11, 0
      %p31 = por %p29, %p30
      %p32 = scmp.ne.s32.totalorder %s21, %s24
      %p33 = scmp.eq.s32.totalorder %s16, 1
      %p34 = por %p32, %p33
      %p35 = scmp.ne.s32.totalorder %s24, %s25
      %p36 = scmp.eq.s32.totalorder %s16, 0
      %p37 = por %p35, %p36
      %p38 = scmp.ne.s32.totalorder %s24, %s25
      %p39 = scmp.eq.s32.totalorder %s17, 1
      %p40 = por %p38, %p39
      %p42 = scmp.ne.s32.totalorder %s25, %s41
      %p43 = scmp.eq.s32.totalorder %s17, 0
      %p44 = por %p42, %p43
      %s46 = sadd.s32 %s45, 1
      %p49 = scmp.eq.s32.totalorder %s11, 1
      %p50 = scmp.ne.s32.totalorder %s45, %s47
      %p51 = scmp.eq.s32.totalorder %s11, 0
      %p52 = por %p50, %p51
      %p53 = scmp.ne.s32.totalorder %s45, %s47
      %p54 = scmp.eq.s32.totalorder %s16, 1
      %p55 = por %p53, %p54
      %p56 = scmp.ne.s32.totalorder %s47, %s48
      %p57 = scmp.eq.s32.totalorder %s16, 0
      %p58 = por %p56, %p57
      %p59 = scmp.ne.s32.totalorder %s47, %s48
      %p60 = scmp.eq.s32.totalorder %s17, 1
      %p61 = por %p59, %p60
      %p63 = scmp.ne.s32.totalorder %s48, %s62
      %p64 = scmp.eq.s32.totalorder %s17, 0
      %p65 = por %p63, %p64
      %s66 = ssub.s32 %s11, %s18
      %p67 = scmp.eq.s32.totalorder %s66, 0
      %s69 = sadd.s32 %s68, 1
      %s70 = scalar_select %p67, %s68, %s69
      %p73 = pneg %p67
      %p74 = scmp.eq.s32.totalorder %s11, 1
      %p75 = por %p73, %p74
      %p76 = scmp.ne.s32.totalorder %s68, %s71
      %p77 = scmp.eq.s32.totalorder %s11, 0
      %p78 = por %p76, %p77
      %p79 = scmp.ne.s32.totalorder %s68, %s71
      %p80 = scmp.eq.s32.totalorder %s16, 1
      %p81 = por %p79, %p80
      %p82 = scmp.ne.s32.totalorder %s71, %s72
      %p83 = scmp.eq.s32.totalorder %s16, 0
      %p84 = por %p82, %p83
      %p85 = scmp.ne.s32.totalorder %s71, %s72
      %p86 = scmp.eq.s32.totalorder %s17, 1
      %p87 = por %p85, %p86
      %p89 = scmp.ne.s32.totalorder %s72, %s88
      %p90 = scmp.eq.s32.totalorder %s17, 0
      %p91 = por %p89, %p90
      %p92 = scmp.le.s32.totalorder 1, %s11
      %p93 = scmp.lt.s32.totalorder %s11, 3
      %p94 = pnand %p92, %p93
      %p95 = pneg %p94
      // Predicated region
      $region9: #{rgcn_forward.1} parent=5 // pred_check
        _
      $region10: #{rgcn_forward.1} parent=5 // pred_check_branch
        %97 = sbr.rel (%p94) target = $region12
      $region11: #{rgcn_forward.1} parent=5 // pred_region
        %s98 = ssub.s32 %s11, 1
        // Predicated region
        $region13: #{rgcn_forward.1} parent=11 // pred_check
          %p99 = pneg %p58
        $region14: #{rgcn_forward.1} parent=11 // pred_check_branch
          %101 = sbr.rel (%p99) target = $region16
        $region15: #{rgcn_forward.1} parent=11 // pred_region
          _
        $region16: #{rgcn_forward.1} parent=11 // pred_fallthru
          _
      $region12: #{rgcn_forward.1} parent=5 // pred_fallthru
        _
      %p102 = scmp.lt.s32.totalorder %s11, 2
      // Predicated region
      $region17: #{rgcn_forward.1} parent=5 // pred_check
        %p103 = pneg %p102
      $region18: #{rgcn_forward.1} parent=5 // pred_check_branch
        %105 = sbr.rel (%p103) target = $region20
      $region19: #{rgcn_forward.1} parent=5 // pred_region
        // Predicated region
        $region21: #{rgcn_forward.1} parent=19 // pred_check
          %p106 = pneg %p31
        $region22: #{rgcn_forward.1} parent=19 // pred_check_branch
          %108 = sbr.rel (%p106) target = $region24
        $region23: #{rgcn_forward.1} parent=19 // pred_region
          %p109 = scmp.lt.s32.totalorder %s11, 1
          %s110 = scalar_select %p109, %s11, 1
          %s111 = smul.addr %s110, 10
          %s112 = smul.addr %s111, 8
          %s113 = scalar_lea.vmem %s0, %s112
        $region24: #{rgcn_forward.1} parent=19 // pred_fallthru
          _
      $region20: #{rgcn_forward.1} parent=5 // pred_fallthru
        _
      %p114 = scmp.le.s32.totalorder 1, %s11
      %p115 = scmp.lt.s32.totalorder %s11, 3
      %p116 = pnand %p114, %p115
      %p117 = pneg %p116
      // Predicated region
      $region25: #{rgcn_forward.1} parent=5 // pred_check
        _
      $region26: #{rgcn_forward.1} parent=5 // pred_check_branch
        %119 = sbr.rel (%p116) target = $region28
      $region27: #{rgcn_forward.1} parent=5 // pred_region
        %s120 = ssub.s32 %s11, 1
        %p121 = scmp.lt.s32.totalorder %s16, 1
        %s122 = scalar_select %p121, %s16, 1
        %s123 = smul.addr %s122, 10
        %s124 = smul.addr %s123, 8
        %s125 = scalar_lea.vmem %s0, %s124
        %p126 = pneg %p37
        %p127 = pneg %p34
        %p128 = pneg %p58
        %p129 = pneg %p55
        %p130 = pneg %p84
        %p131 = pneg %p81
        %s132 = sand.u32 %s71, 1
        %s133 = scalar_lea.sflag [#allocation5], %s132
        %s134 = sand.u32 %s71, 1
        %s135 = smul.addr %s134, 16
        %s136 = scalar_lea.vmem [#allocation4], %s135
        %p137 = scmp.lt.s32.totalorder %s16, 1
        %s138 = scalar_select %p137, %s16, 1
        %s139 = smul.addr %s138, 10
        %s140 = smul.addr %s139, 8
        %s141 = scalar_lea.vmem %s0, %s140
        %v142 = vld [vmem:[%s141] sm:$0xff]
        %v143 = vld [vmem:[%s141 + $0x8] sm:$0xff]
        %v144 = vld [vmem:[%s141 + $0x10] sm:$0xff]
        %v145 = vld [vmem:[%s141 + $0x18] sm:$0xff]
        %v146 = vld [vmem:[%s141 + $0x20] sm:$0xff]
        %v147 = vld [vmem:[%s141 + $0x28] sm:$0xff]
        %v148 = vld [vmem:[%s141 + $0x30] sm:$0xff]
        %v149 = vld [vmem:[%s141 + $0x38] sm:$0xff]
        %v150 = vld [vmem:[%s141 + $0x40] sm:$0xff]
        %v151 = vld [vmem:[%s141 + $0x48] sm:$0xff]
        %vm152 = vcmask 130048
        %v154 = vsel %vm152, %v142, 0
        %v157 = vsel %vm152, %v143, 0
        %159 = vmatprep.subr.mxu0 0.0
        %160 = vmatpush1.msra.mxu0 0.0
        %161 = vmatprep.subr.mxu0 0.0
        %162 = vmatpush1.msra.mxu0 0.0
        %163 = vmatprep.subr.mxu0 0.0
        %164 = vmatpush1.msra.mxu0 0.0
        %165 = vmatprep.subr.mxu0 0.0
        %166 = vmatpush1.msra.mxu0 0.0
        %167 = vmatprep.subr.mxu0 0.0
        %168 = vmatpush1.msra.mxu0 0.0
        %169 = vmatprep.subr.mxu0 0.0
        %170 = vmatpush1.msra.mxu0 0.0
        %171 = vmatprep.subr.mxu0 0.0
        %172 = vmatpush1.msra.mxu0 0.0
        %173 = vmatprep.subr.mxu0 0.0
        %174 = vmatpush1.msra.mxu0 0.0
        %175 = vmatprep.subr.mxu0 0.0
        %176 = vmatpush1.msra.mxu0 0.0
        %177 = vmatprep.subr.mxu0 0.0
        %178 = vmatpush1.msra.mxu0 0.0
        %179 = vmatprep.subr.mxu0 0.0
        %180 = vmatpush1.msra.mxu0 0.0
        %181 = vmatprep.subr.mxu0 0.0
        %182 = vmatpush1.msra.mxu0 0.0
        %183 = vmatprep.subr.mxu0 0.0
        %184 = vmatpush1.msra.mxu0 0.0
        %185 = vmatprep.subr.mxu0 0.0
        %186 = vmatpush1.msra.mxu0 0.0
        %187 = vmatprep.subr.mxu0 0.0
        %188 = vmatpush1.msra.mxu0 %v151
        %189 = vmatprep.subr.mxu0 0.0
        %190 = vmatpush1.msra.mxu0 %v150
        %191 = vmatprep.subr.mxu0 0.0
        %192 = vmatpush2.msra.mxu0 0.0
        %193 = vmatprep.subr.mxu0 0.0
        %194 = vmatpush2.msra.mxu0 0.0
        %195 = vmatprep.subr.mxu0 0.0
        %196 = vmatpush2.msra.mxu0 0.0
        %197 = vmatprep.subr.mxu0 0.0
        %198 = vmatpush2.msra.mxu0 0.0
        %199 = vmatprep.subr.mxu0 0.0
        %200 = vmatpush2.msra.mxu0 0.0
        %201 = vmatprep.subr.mxu0 0.0
        %202 = vmatpush2.msra.mxu0 0.0
        %203 = vmatprep.subr.mxu0 0.0
        %204 = vmatpush2.msra.mxu0 0.0
        %205 = vmatprep.subr.mxu0 0.0
        %206 = vmatpush2.msra.mxu0 0.0
        %207 = vmatprep.subr.mxu0 0.0
        %208 = vmatpush2.msra.mxu0 0.0
        %209 = vmatprep.subr.mxu0 0.0
        %210 = vmatpush2.msra.mxu0 0.0
        %211 = vmatprep.subr.mxu0 0.0
        %212 = vmatpush2.msra.mxu0 0.0
        %213 = vmatprep.subr.mxu0 0.0
        %214 = vmatpush2.msra.mxu0 0.0
        %215 = vmatprep.subr.mxu0 0.0
        %216 = vmatpush2.msra.mxu0 0.0
        %217 = vmatprep.subr.mxu0 0.0
        %218 = vmatpush2.msra.mxu0 0.0
        %219 = vmatprep.subr.mxu0 0.0
        %220 = vmatpush2.msra.mxu0 0.0
        %221 = vmatprep.subr.mxu0 0.0
        %222 = vmatpush2.msra.mxu0 0.0
        %223 = vmatprep.mubr.f32.mxu0 0.0
        %224 = vmatmul.mubr.f32.gmra.mxu0 %v154
        %v225 = vpop.f32.mrf.mxu0
        %v226 = vadd.f32 0.0, %v225
        %v227 = vpop.f32.mrf.mxu0
        %228 = vmatprep.mubr.f32.mxu0 0.0
        %229 = vmatmul.mubr.f32.gmra.mxu0 %v157
        %v230 = vpop.f32.mrf.mxu0
        %v231 = vadd.f32 0.0, %v230
        %v232 = vpop.f32.mrf.mxu0
        %233 = vdwg.mxu0
        %234 = vst.msk [vmem:[#allocation2] sm:$0xff] %vm152, %v226
        %235 = vst.msk [vmem:[#allocation2 + $0x8] sm:$0xff] %vm152, %v231
        %v237 = vsel %vm152, %v144, 0
        %v240 = vsel %vm152, %v145, 0
        %242 = vmatprep.subr.mxu0 0.0
        %243 = vmatpush1.msra.mxu0 0.0
        %244 = vmatprep.subr.mxu0 0.0
        %245 = vmatpush1.msra.mxu0 0.0
        %246 = vmatprep.subr.mxu0 0.0
        %247 = vmatpush1.msra.mxu0 0.0
        %248 = vmatprep.subr.mxu0 0.0
        %249 = vmatpush1.msra.mxu0 0.0
        %250 = vmatprep.subr.mxu0 0.0
        %251 = vmatpush1.msra.mxu0 0.0
        %252 = vmatprep.subr.mxu0 0.0
        %253 = vmatpush1.msra.mxu0 0.0
        %254 = vmatprep.subr.mxu0 0.0
        %255 = vmatpush1.msra.mxu0 0.0
        %256 = vmatprep.subr.mxu0 0.0
        %257 = vmatpush1.msra.mxu0 0.0
        %258 = vmatprep.subr.mxu0 0.0
        %259 = vmatpush1.msra.mxu0 0.0
        %260 = vmatprep.subr.mxu0 0.0
        %261 = vmatpush1.msra.mxu0 0.0
        %262 = vmatprep.subr.mxu0 0.0
        %263 = vmatpush1.msra.mxu0 0.0
        %264 = vmatprep.subr.mxu0 0.0
        %265 = vmatpush1.msra.mxu0 0.0
        %266 = vmatprep.subr.mxu0 0.0
        %267 = vmatpush1.msra.mxu0 0.0
        %268 = vmatprep.subr.mxu0 0.0
        %269 = vmatpush1.msra.mxu0 0.0
        %270 = vmatprep.subr.mxu0 0.0
        %271 = vmatpush1.msra.mxu0 %v151
        %272 = vmatprep.subr.mxu0 0.0
        %273 = vmatpush1.msra.mxu0 %v150
        %274 = vmatprep.subr.mxu0 0.0
        %275 = vmatpush2.msra.mxu0 0.0
        %276 = vmatprep.subr.mxu0 0.0
        %277 = vmatpush2.msra.mxu0 0.0
        %278 = vmatprep.subr.mxu0 0.0
        %279 = vmatpush2.msra.mxu0 0.0
        %280 = vmatprep.subr.mxu0 0.0
        %281 = vmatpush2.msra.mxu0 0.0
        %282 = vmatprep.subr.mxu0 0.0
        %283 = vmatpush2.msra.mxu0 0.0
        %284 = vmatprep.subr.mxu0 0.0
        %285 = vmatpush2.msra.mxu0 0.0
        %286 = vmatprep.subr.mxu0 0.0
        %287 = vmatpush2.msra.mxu0 0.0
        %288 = vmatprep.subr.mxu0 0.0
        %289 = vmatpush2.msra.mxu0 0.0
        %290 = vmatprep.subr.mxu0 0.0
        %291 = vmatpush2.msra.mxu0 0.0
        %292 = vmatprep.subr.mxu0 0.0
        %293 = vmatpush2.msra.mxu0 0.0
        %294 = vmatprep.subr.mxu0 0.0
        %295 = vmatpush2.msra.mxu0 0.0
        %296 = vmatprep.subr.mxu0 0.0
        %297 = vmatpush2.msra.mxu0 0.0
        %298 = vmatprep.subr.mxu0 0.0
        %299 = vmatpush2.msra.mxu0 0.0
        %300 = vmatprep.subr.mxu0 0.0
        %301 = vmatpush2.msra.mxu0 0.0
        %302 = vmatprep.subr.mxu0 0.0
        %303 = vmatpush2.msra.mxu0 0.0
        %304 = vmatprep.subr.mxu0 0.0
        %305 = vmatpush2.msra.mxu0 0.0
        %306 = vmatprep.mubr.f32.mxu0 0.0
        %307 = vmatmul.mubr.f32.gmra.mxu0 %v237
        %v308 = vpop.f32.mrf.mxu0
        %v309 = vadd.f32 0.0, %v308
        %v310 = vpop.f32.mrf.mxu0
        %311 = vmatprep.mubr.f32.mxu0 0.0
        %312 = vmatmul.mubr.f32.gmra.mxu0 %v240
        %v313 = vpop.f32.mrf.mxu0
        %v314 = vadd.f32 0.0, %v313
        %v315 = vpop.f32.mrf.mxu0
        %316 = vdwg.mxu0
        %319 = vrot.lane.b32.xlu0 %v309, 16
        %v320 = vpop.permute.xlu0 %319
        %321 = vrot.lane.b32.xlu0 %v314, 16
        %v322 = vpop.permute.xlu0 %321
        %vm325 = vcmask 261248
        %326 = vst.msk [vmem:[#allocation2] sm:$0xff] %vm325, %v320
        %327 = vst.msk [vmem:[#allocation2 + $0x8] sm:$0xff] %vm325, %v322
        %v329 = vsel %vm152, %v146, 0
        %v332 = vsel %vm152, %v147, 0
        %334 = vmatprep.subr.mxu0 0.0
        %335 = vmatpush1.msra.mxu0 0.0
        %336 = vmatprep.subr.mxu0 0.0
        %337 = vmatpush1.msra.mxu0 0.0
        %338 = vmatprep.subr.mxu0 0.0
        %339 = vmatpush1.msra.mxu0 0.0
        %340 = vmatprep.subr.mxu0 0.0
        %341 = vmatpush1.msra.mxu0 0.0
        %342 = vmatprep.subr.mxu0 0.0
        %343 = vmatpush1.msra.mxu0 0.0
        %344 = vmatprep.subr.mxu0 0.0
        %345 = vmatpush1.msra.mxu0 0.0
        %346 = vmatprep.subr.mxu0 0.0
        %347 = vmatpush1.msra.mxu0 0.0
        %348 = vmatprep.subr.mxu0 0.0
        %349 = vmatpush1.msra.mxu0 0.0
        %350 = vmatprep.subr.mxu0 0.0
        %351 = vmatpush1.msra.mxu0 0.0
        %352 = vmatprep.subr.mxu0 0.0
        %353 = vmatpush1.msra.mxu0 0.0
        %354 = vmatprep.subr.mxu0 0.0
        %355 = vmatpush1.msra.mxu0 0.0
        %356 = vmatprep.subr.mxu0 0.0
        %357 = vmatpush1.msra.mxu0 0.0
        %358 = vmatprep.subr.mxu0 0.0
        %359 = vmatpush1.msra.mxu0 0.0
        %360 = vmatprep.subr.mxu0 0.0
        %361 = vmatpush1.msra.mxu0 0.0
        %362 = vmatprep.subr.mxu0 0.0
        %363 = vmatpush1.msra.mxu0 %v151
        %364 = vmatprep.subr.mxu0 0.0
        %365 = vmatpush1.msra.mxu0 %v150
        %366 = vmatprep.subr.mxu0 0.0
        %367 = vmatpush2.msra.mxu0 0.0
        %368 = vmatprep.subr.mxu0 0.0
        %369 = vmatpush2.msra.mxu0 0.0
        %370 = vmatprep.subr.mxu0 0.0
        %371 = vmatpush2.msra.mxu0 0.0
        %372 = vmatprep.subr.mxu0 0.0
        %373 = vmatpush2.msra.mxu0 0.0
        %374 = vmatprep.subr.mxu0 0.0
        %375 = vmatpush2.msra.mxu0 0.0
        %376 = vmatprep.subr.mxu0 0.0
        %377 = vmatpush2.msra.mxu0 0.0
        %378 = vmatprep.subr.mxu0 0.0
        %379 = vmatpush2.msra.mxu0 0.0
        %380 = vmatprep.subr.mxu0 0.0
        %381 = vmatpush2.msra.mxu0 0.0
        %382 = vmatprep.subr.mxu0 0.0
        %383 = vmatpush2.msra.mxu0 0.0
        %384 = vmatprep.subr.mxu0 0.0
        %385 = vmatpush2.msra.mxu0 0.0
        %386 = vmatprep.subr.mxu0 0.0
        %387 = vmatpush2.msra.mxu0 0.0
        %388 = vmatprep.subr.mxu0 0.0
        %389 = vmatpush2.msra.mxu0 0.0
        %390 = vmatprep.subr.mxu0 0.0
        %391 = vmatpush2.msra.mxu0 0.0
        %392 = vmatprep.subr.mxu0 0.0
        %393 = vmatpush2.msra.mxu0 0.0
        %394 = vmatprep.subr.mxu0 0.0
        %395 = vmatpush2.msra.mxu0 0.0
        %396 = vmatprep.subr.mxu0 0.0
        %397 = vmatpush2.msra.mxu0 0.0
        %398 = vmatprep.mubr.f32.mxu0 0.0
        %399 = vmatmul.mubr.f32.gmra.mxu0 %v329
        %v400 = vpop.f32.mrf.mxu0
        %v401 = vadd.f32 0.0, %v400
        %v402 = vpop.f32.mrf.mxu0
        %403 = vmatprep.mubr.f32.mxu0 0.0
        %404 = vmatmul.mubr.f32.gmra.mxu0 %v332
        %v405 = vpop.f32.mrf.mxu0
        %v406 = vadd.f32 0.0, %v405
        %v407 = vpop.f32.mrf.mxu0
        %408 = vdwg.mxu0
        %411 = vrot.lane.b32.xlu0 %v401, 32
        %v412 = vpop.permute.xlu0 %411
        %413 = vrot.lane.b32.xlu0 %v406, 32
        %v414 = vpop.permute.xlu0 %413
        %vm417 = vcmask 392448
        %418 = vst.msk [vmem:[#allocation2] sm:$0xff] %vm417, %v412
        %419 = vst.msk [vmem:[#allocation2 + $0x8] sm:$0xff] %vm417, %v414
        %v421 = vsel %vm152, %v148, 0
        %v424 = vsel %vm152, %v149, 0
        %426 = vmatprep.subr.mxu0 0.0
        %427 = vmatpush1.msra.mxu0 0.0
        %428 = vmatprep.subr.mxu0 0.0
        %429 = vmatpush1.msra.mxu0 0.0
        %430 = vmatprep.subr.mxu0 0.0
        %431 = vmatpush1.msra.mxu0 0.0
        %432 = vmatprep.subr.mxu0 0.0
        %433 = vmatpush1.msra.mxu0 0.0
        %434 = vmatprep.subr.mxu0 0.0
        %435 = vmatpush1.msra.mxu0 0.0
        %436 = vmatprep.subr.mxu0 0.0
        %437 = vmatpush1.msra.mxu0 0.0
        %438 = vmatprep.subr.mxu0 0.0
        %439 = vmatpush1.msra.mxu0 0.0
        %440 = vmatprep.subr.mxu0 0.0
        %441 = vmatpush1.msra.mxu0 0.0
        %442 = vmatprep.subr.mxu0 0.0
        %443 = vmatpush1.msra.mxu0 0.0
        %444 = vmatprep.subr.mxu0 0.0
        %445 = vmatpush1.msra.mxu0 0.0
        %446 = vmatprep.subr.mxu0 0.0
        %447 = vmatpush1.msra.mxu0 0.0
        %448 = vmatprep.subr.mxu0 0.0
        %449 = vmatpush1.msra.mxu0 0.0
        %450 = vmatprep.subr.mxu0 0.0
        %451 = vmatpush1.msra.mxu0 0.0
        %452 = vmatprep.subr.mxu0 0.0
        %453 = vmatpush1.msra.mxu0 0.0
        %454 = vmatprep.subr.mxu0 0.0
        %455 = vmatpush1.msra.mxu0 %v151
        %456 = vmatprep.subr.mxu0 0.0
        %457 = vmatpush1.msra.mxu0 %v150
        %458 = vmatprep.subr.mxu0 0.0
        %459 = vmatpush2.msra.mxu0 0.0
        %460 = vmatprep.subr.mxu0 0.0
        %461 = vmatpush2.msra.mxu0 0.0
        %462 = vmatprep.subr.mxu0 0.0
        %463 = vmatpush2.msra.mxu0 0.0
        %464 = vmatprep.subr.mxu0 0.0
        %465 = vmatpush2.msra.mxu0 0.0
        %466 = vmatprep.subr.mxu0 0.0
        %467 = vmatpush2.msra.mxu0 0.0
        %468 = vmatprep.subr.mxu0 0.0
        %469 = vmatpush2.msra.mxu0 0.0
        %470 = vmatprep.subr.mxu0 0.0
        %471 = vmatpush2.msra.mxu0 0.0
        %472 = vmatprep.subr.mxu0 0.0
        %473 = vmatpush2.msra.mxu0 0.0
        %474 = vmatprep.subr.mxu0 0.0
        %475 = vmatpush2.msra.mxu0 0.0
        %476 = vmatprep.subr.mxu0 0.0
        %477 = vmatpush2.msra.mxu0 0.0
        %478 = vmatprep.subr.mxu0 0.0
        %479 = vmatpush2.msra.mxu0 0.0
        %480 = vmatprep.subr.mxu0 0.0
        %481 = vmatpush2.msra.mxu0 0.0
        %482 = vmatprep.subr.mxu0 0.0
        %483 = vmatpush2.msra.mxu0 0.0
        %484 = vmatprep.subr.mxu0 0.0
        %485 = vmatpush2.msra.mxu0 0.0
        %486 = vmatprep.subr.mxu0 0.0
        %487 = vmatpush2.msra.mxu0 0.0
        %488 = vmatprep.subr.mxu0 0.0
        %489 = vmatpush2.msra.mxu0 0.0
        %490 = vmatprep.mubr.f32.mxu0 0.0
        %491 = vmatmul.mubr.f32.gmra.mxu0 %v421
        %v492 = vpop.f32.mrf.mxu0
        %v493 = vadd.f32 0.0, %v492
        %v494 = vpop.f32.mrf.mxu0
        %495 = vmatprep.mubr.f32.mxu0 0.0
        %496 = vmatmul.mubr.f32.gmra.mxu0 %v424
        %v497 = vpop.f32.mrf.mxu0
        %v498 = vadd.f32 0.0, %v497
        %v499 = vpop.f32.mrf.mxu0
        %500 = vdwg.mxu0
        %503 = vrot.lane.b32.xlu0 %v493, 48
        %v504 = vpop.permute.xlu0 %503
        %505 = vrot.lane.b32.xlu0 %v498, 48
        %v506 = vpop.permute.xlu0 %505
        %vm509 = vcmask 523648
        %510 = vst.msk [vmem:[#allocation2] sm:$0xff] %vm509, %v504
        %511 = vst.msk [vmem:[#allocation2 + $0x8] sm:$0xff] %vm509, %v506
        %514 = vrot.lane.b32.xlu0 %v150, 64
        %v515 = vpop.permute.xlu0 %514
        %516 = vrot.lane.b32.xlu0 %v151, 64
        %v517 = vpop.permute.xlu0 %516
        %vm520 = vcmask 654848
        %521 = vst.msk [vmem:[#allocation2] sm:$0xff] %vm520, %v515
        %522 = vst.msk [vmem:[#allocation2 + $0x8] sm:$0xff] %vm520, %v517
        %v523 = vld [vmem:[%s1] sm:$0xff]
        %v524 = vld [vmem:[%s1 + $0x8] sm:$0xff]
        %v525 = vld [vmem:[%s1 + $0x10] sm:$0xff]
        %v526 = vld [vmem:[%s1 + $0x18] sm:$0xff]
        %v527 = vld [vmem:[%s1 + $0x20] sm:$0xff]
        %v528 = vld [vmem:[%s1 + $0x28] sm:$0xff]
        %v529 = vld [vmem:[%s1 + $0x30] sm:$0xff]
        %v530 = vld [vmem:[%s1 + $0x38] sm:$0xff]
        %v531 = vld [vmem:[%s1 + $0x40] sm:$0xff]
        %v532 = vld [vmem:[%s1 + $0x48] sm:$0xff]
        %v533 = vld [vmem:[%s1 + $0x50] sm:$0x1]
        %v534 = vld [vmem:[#allocation2] sm:$0xff]
        %v535 = vld [vmem:[#allocation2 + $0x8] sm:$0xff]
        %v536 = vlaneseq
        %v537 = vshrl.u32 %v536, 7
        %v538 = vsub.s32 0, %v537
        %v539 = vrot.slane %v533, %v538
        %vm540 = vcmask 654336
        %v542 = vsel %vm540, %v534, 0
        %v545 = vsel %vm540, %v535, 0
        %547 = vmatprep.subr.mxu0 0.0
        %548 = vmatpush1.msra.mxu0 0.0
        %549 = vmatprep.subr.mxu0 0.0
        %550 = vmatpush1.msra.mxu0 0.0
        %551 = vmatprep.subr.mxu0 0.0
        %552 = vmatpush1.msra.mxu0 0.0
        %553 = vmatprep.subr.mxu0 0.0
        %554 = vmatpush1.msra.mxu0 0.0
        %555 = vmatprep.subr.mxu0 0.0
        %556 = vmatpush1.msra.mxu0 0.0
        %557 = vmatprep.subr.mxu0 0.0
        %558 = vmatpush1.msra.mxu0 0.0
        %559 = vmatprep.subr.mxu0 0.0
        %560 = vmatpush1.msra.mxu0 %v532
        %561 = vmatprep.subr.mxu0 0.0
        %562 = vmatpush1.msra.mxu0 %v531
        %563 = vmatprep.subr.mxu0 0.0
        %564 = vmatpush1.msra.mxu0 %v530
        %565 = vmatprep.subr.mxu0 0.0
        %566 = vmatpush1.msra.mxu0 %v529
        %567 = vmatprep.subr.mxu0 0.0
        %568 = vmatpush1.msra.mxu0 %v528
        %569 = vmatprep.subr.mxu0 0.0
        %570 = vmatpush1.msra.mxu0 %v527
        %571 = vmatprep.subr.mxu0 0.0
        %572 = vmatpush1.msra.mxu0 %v526
        %573 = vmatprep.subr.mxu0 0.0
        %574 = vmatpush1.msra.mxu0 %v525
        %575 = vmatprep.subr.mxu0 0.0
        %576 = vmatpush1.msra.mxu0 %v524
        %577 = vmatprep.subr.mxu0 0.0
        %578 = vmatpush1.msra.mxu0 %v523
        %579 = vmatprep.subr.mxu0 0.0
        %580 = vmatpush2.msra.mxu0 0.0
        %581 = vmatprep.subr.mxu0 0.0
        %582 = vmatpush2.msra.mxu0 0.0
        %583 = vmatprep.subr.mxu0 0.0
        %584 = vmatpush2.msra.mxu0 0.0
        %585 = vmatprep.subr.mxu0 0.0
        %586 = vmatpush2.msra.mxu0 0.0
        %587 = vmatprep.subr.mxu0 0.0
        %588 = vmatpush2.msra.mxu0 0.0
        %589 = vmatprep.subr.mxu0 0.0
        %590 = vmatpush2.msra.mxu0 0.0
        %591 = vmatprep.subr.mxu0 0.0
        %592 = vmatpush2.msra.mxu0 0.0
        %593 = vmatprep.subr.mxu0 0.0
        %594 = vmatpush2.msra.mxu0 0.0
        %595 = vmatprep.subr.mxu0 0.0
        %596 = vmatpush2.msra.mxu0 0.0
        %597 = vmatprep.subr.mxu0 0.0
        %598 = vmatpush2.msra.mxu0 0.0
        %599 = vmatprep.subr.mxu0 0.0
        %600 = vmatpush2.msra.mxu0 0.0
        %601 = vmatprep.subr.mxu0 0.0
        %602 = vmatpush2.msra.mxu0 0.0
        %603 = vmatprep.subr.mxu0 0.0
        %604 = vmatpush2.msra.mxu0 0.0
        %605 = vmatprep.subr.mxu0 0.0
        %606 = vmatpush2.msra.mxu0 0.0
        %607 = vmatprep.subr.mxu0 0.0
        %608 = vmatpush2.msra.mxu0 0.0
        %609 = vmatprep.subr.mxu0 0.0
        %610 = vmatpush2.msra.mxu0 0.0
        %611 = vmatprep.mubr.f32.mxu0 0.0
        %612 = vmatmul.mubr.f32.gmra.mxu0 %v542
        %v613 = vpop.f32.mrf.mxu0
        %v614 = vadd.f32 %v539, %v613
        %v615 = vpop.f32.mrf.mxu0
        %616 = vmatprep.mubr.f32.mxu0 0.0
        %617 = vmatmul.mubr.f32.gmra.mxu0 %v545
        %v618 = vpop.f32.mrf.mxu0
        %v619 = vadd.f32 %v539, %v618
        %v620 = vpop.f32.mrf.mxu0
        %621 = vdwg.mxu0
        %622 = vmatprep.subr.mxu0 0.0
        %623 = vmatpush1.msra.mxu0 0.0
        %624 = vmatprep.subr.mxu0 0.0
        %625 = vmatpush1.msra.mxu0 0.0
        %626 = vmatprep.subr.mxu0 0.0
        %627 = vmatpush1.msra.mxu0 0.0
        %628 = vmatprep.subr.mxu0 0.0
        %629 = vmatpush1.msra.mxu0 0.0
        %630 = vmatprep.subr.mxu0 0.0
        %631 = vmatpush1.msra.mxu0 0.0
        %632 = vmatprep.subr.mxu0 0.0
        %633 = vmatpush1.msra.mxu0 0.0
        %634 = vmatprep.subr.mxu0 0.0
        %635 = vmatpush1.msra.mxu0 0.0
        %636 = vmatprep.subr.mxu0 0.0
        %637 = vmatpush1.msra.mxu0 0.0
        %638 = vmatprep.subr.mxu0 0.0
        %639 = vmatpush1.msra.mxu0 0.0
        %640 = vmatprep.subr.mxu0 0.0
        %641 = vmatpush1.msra.mxu0 0.0
        %642 = vmatprep.subr.mxu0 0.0
        %643 = vmatpush1.msra.mxu0 0.0
        %644 = vmatprep.subr.mxu0 0.0
        %645 = vmatpush1.msra.mxu0 0.0
        %646 = vmatprep.subr.mxu0 0.0
        %647 = vmatpush1.msra.mxu0 0.0
        %648 = vmatprep.subr.mxu0 0.0
        %649 = vmatpush1.msra.mxu0 0.0
        %650 = vmatprep.subr.mxu0 0.0
        %651 = vmatpush1.msra.mxu0 %v619
        %652 = vmatprep.subr.mxu0 0.0
        %653 = vmatpush1.msra.mxu0 %v614
        %654 = vmatprep.subr.mxu0 0.0
        %655 = vmatpush2.msra.mxu0 0.0
        %656 = vmatprep.subr.mxu0 0.0
        %657 = vmatpush2.msra.mxu0 0.0
        %658 = vmatprep.subr.mxu0 0.0
        %659 = vmatpush2.msra.mxu0 0.0
        %660 = vmatprep.subr.mxu0 0.0
        %661 = vmatpush2.msra.mxu0 0.0
        %662 = vmatprep.subr.mxu0 0.0
        %663 = vmatpush2.msra.mxu0 0.0
        %664 = vmatprep.subr.mxu0 0.0
        %665 = vmatpush2.msra.mxu0 0.0
        %666 = vmatprep.subr.mxu0 0.0
        %667 = vmatpush2.msra.mxu0 0.0
        %668 = vmatprep.subr.mxu0 0.0
        %669 = vmatpush2.msra.mxu0 0.0
        %670 = vmatprep.subr.mxu0 0.0
        %671 = vmatpush2.msra.mxu0 0.0
        %672 = vmatprep.subr.mxu0 0.0
        %673 = vmatpush2.msra.mxu0 0.0
        %674 = vmatprep.subr.mxu0 0.0
        %675 = vmatpush2.msra.mxu0 0.0
        %676 = vmatprep.subr.mxu0 0.0
        %677 = vmatpush2.msra.mxu0 0.0
        %678 = vmatprep.subr.mxu0 0.0
        %679 = vmatpush2.msra.mxu0 0.0
        %680 = vmatprep.subr.mxu0 0.0
        %681 = vmatpush2.msra.mxu0 0.0
        %682 = vmatprep.subr.mxu0 0.0
        %683 = vmatpush2.msra.mxu0 0.0
        %684 = vmatprep.subr.mxu0 0.0
        %685 = vmatpush2.msra.mxu0 0.0
        %686 = vmatprep.mubr.f32.mxu0 0.0
        %687 = vmatmul.mubr.f32.gmra.mxu0 %v154
        %v688 = vpop.f32.mrf.mxu0
        %v689 = vadd.f32 0.0, %v688
        %v690 = vpop.f32.mrf.mxu0
        %691 = vmatprep.mubr.f32.mxu0 0.0
        %692 = vmatmul.mubr.f32.gmra.mxu0 %v157
        %v693 = vpop.f32.mrf.mxu0
        %v694 = vadd.f32 0.0, %v693
        %v695 = vpop.f32.mrf.mxu0
        %696 = vdwg.mxu0
        %vm697 = vcmask 261120
        %698 = vst.msk [vmem:[#allocation3] sm:$0xff] %vm697, %v689
        %699 = vst.msk [vmem:[#allocation3 + $0x10] sm:$0xff] %vm697, %v694
        %700 = vmatprep.subr.mxu0 0.0
        %701 = vmatpush1.msra.mxu0 0.0
        %702 = vmatprep.subr.mxu0 0.0
        %703 = vmatpush1.msra.mxu0 0.0
        %704 = vmatprep.subr.mxu0 0.0
        %705 = vmatpush1.msra.mxu0 0.0
        %706 = vmatprep.subr.mxu0 0.0
        %707 = vmatpush1.msra.mxu0 0.0
        %708 = vmatprep.subr.mxu0 0.0
        %709 = vmatpush1.msra.mxu0 0.0
        %710 = vmatprep.subr.mxu0 0.0
        %711 = vmatpush1.msra.mxu0 0.0
        %712 = vmatprep.subr.mxu0 0.0
        %713 = vmatpush1.msra.mxu0 0.0
        %714 = vmatprep.subr.mxu0 0.0
        %715 = vmatpush1.msra.mxu0 0.0
        %716 = vmatprep.subr.mxu0 0.0
        %717 = vmatpush1.msra.mxu0 0.0
        %718 = vmatprep.subr.mxu0 0.0
        %719 = vmatpush1.msra.mxu0 0.0
        %720 = vmatprep.subr.mxu0 0.0
        %721 = vmatpush1.msra.mxu0 0.0
        %722 = vmatprep.subr.mxu0 0.0
        %723 = vmatpush1.msra.mxu0 0.0
        %724 = vmatprep.subr.mxu0 0.0
        %725 = vmatpush1.msra.mxu0 0.0
        %726 = vmatprep.subr.mxu0 0.0
        %727 = vmatpush1.msra.mxu0 0.0
        %728 = vmatprep.subr.mxu0 0.0
        %729 = vmatpush1.msra.mxu0 %v619
        %730 = vmatprep.subr.mxu0 0.0
        %731 = vmatpush1.msra.mxu0 %v614
        %732 = vmatprep.subr.mxu0 0.0
        %733 = vmatpush2.msra.mxu0 0.0
        %734 = vmatprep.subr.mxu0 0.0
        %735 = vmatpush2.msra.mxu0 0.0
        %736 = vmatprep.subr.mxu0 0.0
        %737 = vmatpush2.msra.mxu0 0.0
        %738 = vmatprep.subr.mxu0 0.0
        %739 = vmatpush2.msra.mxu0 0.0
        %740 = vmatprep.subr.mxu0 0.0
        %741 = vmatpush2.msra.mxu0 0.0
        %742 = vmatprep.subr.mxu0 0.0
        %743 = vmatpush2.msra.mxu0 0.0
        %744 = vmatprep.subr.mxu0 0.0
        %745 = vmatpush2.msra.mxu0 0.0
        %746 = vmatprep.subr.mxu0 0.0
        %747 = vmatpush2.msra.mxu0 0.0
        %748 = vmatprep.subr.mxu0 0.0
        %749 = vmatpush2.msra.mxu0 0.0
        %750 = vmatprep.subr.mxu0 0.0
        %751 = vmatpush2.msra.mxu0 0.0
        %752 = vmatprep.subr.mxu0 0.0
        %753 = vmatpush2.msra.mxu0 0.0
        %754 = vmatprep.subr.mxu0 0.0
        %755 = vmatpush2.msra.mxu0 0.0
        %756 = vmatprep.subr.mxu0 0.0
        %757 = vmatpush2.msra.mxu0 0.0
        %758 = vmatprep.subr.mxu0 0.0
        %759 = vmatpush2.msra.mxu0 0.0
        %760 = vmatprep.subr.mxu0 0.0
        %761 = vmatpush2.msra.mxu0 0.0
        %762 = vmatprep.subr.mxu0 0.0
        %763 = vmatpush2.msra.mxu0 0.0
        %764 = vmatprep.mubr.f32.mxu0 0.0
        %765 = vmatmul.mubr.f32.gmra.mxu0 %v237
        %v766 = vpop.f32.mrf.mxu0
        %v767 = vadd.f32 0.0, %v766
        %v768 = vpop.f32.mrf.mxu0
        %769 = vmatprep.mubr.f32.mxu0 0.0
        %770 = vmatmul.mubr.f32.gmra.mxu0 %v240
        %v771 = vpop.f32.mrf.mxu0
        %v772 = vadd.f32 0.0, %v771
        %v773 = vpop.f32.mrf.mxu0
        %774 = vdwg.mxu0
        %777 = vrot.lane.b32.xlu0 %v767, 32
        %v778 = vpop.permute.xlu0 %777
        %779 = vrot.lane.b32.xlu0 %v772, 32
        %v780 = vpop.permute.xlu0 %779
        %vm783 = vcmask 523520
        %784 = vst.msk [vmem:[#allocation3] sm:$0xff] %vm783, %v778
        %785 = vst.msk [vmem:[#allocation3 + $0x10] sm:$0xff] %vm783, %v780
        %786 = vmatprep.subr.mxu0 0.0
        %787 = vmatpush1.msra.mxu0 0.0
        %788 = vmatprep.subr.mxu0 0.0
        %789 = vmatpush1.msra.mxu0 0.0
        %790 = vmatprep.subr.mxu0 0.0
        %791 = vmatpush1.msra.mxu0 0.0
        %792 = vmatprep.subr.mxu0 0.0
        %793 = vmatpush1.msra.mxu0 0.0
        %794 = vmatprep.subr.mxu0 0.0
        %795 = vmatpush1.msra.mxu0 0.0
        %796 = vmatprep.subr.mxu0 0.0
        %797 = vmatpush1.msra.mxu0 0.0
        %798 = vmatprep.subr.mxu0 0.0
        %799 = vmatpush1.msra.mxu0 0.0
        %800 = vmatprep.subr.mxu0 0.0
        %801 = vmatpush1.msra.mxu0 0.0
        %802 = vmatprep.subr.mxu0 0.0
        %803 = vmatpush1.msra.mxu0 0.0
        %804 = vmatprep.subr.mxu0 0.0
        %805 = vmatpush1.msra.mxu0 0.0
        %806 = vmatprep.subr.mxu0 0.0
        %807 = vmatpush1.msra.mxu0 0.0
        %808 = vmatprep.subr.mxu0 0.0
        %809 = vmatpush1.msra.mxu0 0.0
        %810 = vmatprep.subr.mxu0 0.0
        %811 = vmatpush1.msra.mxu0 0.0
        %812 = vmatprep.subr.mxu0 0.0
        %813 = vmatpush1.msra.mxu0 0.0
        %814 = vmatprep.subr.mxu0 0.0
        %815 = vmatpush1.msra.mxu0 %v619
        %816 = vmatprep.subr.mxu0 0.0
        %817 = vmatpush1.msra.mxu0 %v614
        %818 = vmatprep.subr.mxu0 0.0
        %819 = vmatpush2.msra.mxu0 0.0
        %820 = vmatprep.subr.mxu0 0.0
        %821 = vmatpush2.msra.mxu0 0.0
        %822 = vmatprep.subr.mxu0 0.0
        %823 = vmatpush2.msra.mxu0 0.0
        %824 = vmatprep.subr.mxu0 0.0
        %825 = vmatpush2.msra.mxu0 0.0
        %826 = vmatprep.subr.mxu0 0.0
        %827 = vmatpush2.msra.mxu0 0.0
        %828 = vmatprep.subr.mxu0 0.0
        %829 = vmatpush2.msra.mxu0 0.0
        %830 = vmatprep.subr.mxu0 0.0
        %831 = vmatpush2.msra.mxu0 0.0
        %832 = vmatprep.subr.mxu0 0.0
        %833 = vmatpush2.msra.mxu0 0.0
        %834 = vmatprep.subr.mxu0 0.0
        %835 = vmatpush2.msra.mxu0 0.0
        %836 = vmatprep.subr.mxu0 0.0
        %837 = vmatpush2.msra.mxu0 0.0
        %838 = vmatprep.subr.mxu0 0.0
        %839 = vmatpush2.msra.mxu0 0.0
        %840 = vmatprep.subr.mxu0 0.0
        %841 = vmatpush2.msra.mxu0 0.0
        %842 = vmatprep.subr.mxu0 0.0
        %843 = vmatpush2.msra.mxu0 0.0
        %844 = vmatprep.subr.mxu0 0.0
        %845 = vmatpush2.msra.mxu0 0.0
        %846 = vmatprep.subr.mxu0 0.0
        %847 = vmatpush2.msra.mxu0 0.0
        %848 = vmatprep.subr.mxu0 0.0
        %849 = vmatpush2.msra.mxu0 0.0
        %850 = vmatprep.mubr.f32.mxu0 0.0
        %851 = vmatmul.mubr.f32.gmra.mxu0 %v329
        %v852 = vpop.f32.mrf.mxu0
        %v853 = vadd.f32 0.0, %v852
        %v854 = vpop.f32.mrf.mxu0
        %855 = vmatprep.mubr.f32.mxu0 0.0
        %856 = vmatmul.mubr.f32.gmra.mxu0 %v332
        %v857 = vpop.f32.mrf.mxu0
        %v858 = vadd.f32 0.0, %v857
        %v859 = vpop.f32.mrf.mxu0
        %860 = vdwg.mxu0
        %863 = vrot.lane.b32.xlu0 %v853, 64
        %v864 = vpop.permute.xlu0 %863
        %865 = vrot.lane.b32.xlu0 %v858, 64
        %v866 = vpop.permute.xlu0 %865
        %vm869 = vcmask 785920
        %870 = vst.msk [vmem:[#allocation3] sm:$0xff] %vm869, %v864
        %871 = vst.msk [vmem:[#allocation3 + $0x10] sm:$0xff] %vm869, %v866
        %872 = vmatprep.subr.mxu0 0.0
        %873 = vmatpush1.msra.mxu0 0.0
        %874 = vmatprep.subr.mxu0 0.0
        %875 = vmatpush1.msra.mxu0 0.0
        %876 = vmatprep.subr.mxu0 0.0
        %877 = vmatpush1.msra.mxu0 0.0
        %878 = vmatprep.subr.mxu0 0.0
        %879 = vmatpush1.msra.mxu0 0.0
        %880 = vmatprep.subr.mxu0 0.0
        %881 = vmatpush1.msra.mxu0 0.0
        %882 = vmatprep.subr.mxu0 0.0
        %883 = vmatpush1.msra.mxu0 0.0
        %884 = vmatprep.subr.mxu0 0.0
        %885 = vmatpush1.msra.mxu0 0.0
        %886 = vmatprep.subr.mxu0 0.0
        %887 = vmatpush1.msra.mxu0 0.0
        %888 = vmatprep.subr.mxu0 0.0
        %889 = vmatpush1.msra.mxu0 0.0
        %890 = vmatprep.subr.mxu0 0.0
        %891 = vmatpush1.msra.mxu0 0.0
        %892 = vmatprep.subr.mxu0 0.0
        %893 = vmatpush1.msra.mxu0 0.0
        %894 = vmatprep.subr.mxu0 0.0
        %895 = vmatpush1.msra.mxu0 0.0
        %896 = vmatprep.subr.mxu0 0.0
        %897 = vmatpush1.msra.mxu0 0.0
        %898 = vmatprep.subr.mxu0 0.0
        %899 = vmatpush1.msra.mxu0 0.0
        %900 = vmatprep.subr.mxu0 0.0
        %901 = vmatpush1.msra.mxu0 %v619
        %902 = vmatprep.subr.mxu0 0.0
        %903 = vmatpush1.msra.mxu0 %v614
        %904 = vmatprep.subr.mxu0 0.0
        %905 = vmatpush2.msra.mxu0 0.0
        %906 = vmatprep.subr.mxu0 0.0
        %907 = vmatpush2.msra.mxu0 0.0
        %908 = vmatprep.subr.mxu0 0.0
        %909 = vmatpush2.msra.mxu0 0.0
        %910 = vmatprep.subr.mxu0 0.0
        %911 = vmatpush2.msra.mxu0 0.0
        %912 = vmatprep.subr.mxu0 0.0
        %913 = vmatpush2.msra.mxu0 0.0
        %914 = vmatprep.subr.mxu0 0.0
        %915 = vmatpush2.msra.mxu0 0.0
        %916 = vmatprep.subr.mxu0 0.0
        %917 = vmatpush2.msra.mxu0 0.0
        %918 = vmatprep.subr.mxu0 0.0
        %919 = vmatpush2.msra.mxu0 0.0
        %920 = vmatprep.subr.mxu0 0.0
        %921 = vmatpush2.msra.mxu0 0.0
        %922 = vmatprep.subr.mxu0 0.0
        %923 = vmatpush2.msra.mxu0 0.0
        %924 = vmatprep.subr.mxu0 0.0
        %925 = vmatpush2.msra.mxu0 0.0
        %926 = vmatprep.subr.mxu0 0.0
        %927 = vmatpush2.msra.mxu0 0.0
        %928 = vmatprep.subr.mxu0 0.0
        %929 = vmatpush2.msra.mxu0 0.0
        %930 = vmatprep.subr.mxu0 0.0
        %931 = vmatpush2.msra.mxu0 0.0
        %932 = vmatprep.subr.mxu0 0.0
        %933 = vmatpush2.msra.mxu0 0.0
        %934 = vmatprep.subr.mxu0 0.0
        %935 = vmatpush2.msra.mxu0 0.0
        %936 = vmatprep.mubr.f32.mxu0 0.0
        %937 = vmatmul.mubr.f32.gmra.mxu0 %v421
        %v938 = vpop.f32.mrf.mxu0
        %v939 = vadd.f32 0.0, %v938
        %v940 = vpop.f32.mrf.mxu0
        %941 = vmatprep.mubr.f32.mxu0 0.0
        %942 = vmatmul.mubr.f32.gmra.mxu0 %v424
        %v943 = vpop.f32.mrf.mxu0
        %v944 = vadd.f32 0.0, %v943
        %v945 = vpop.f32.mrf.mxu0
        %946 = vdwg.mxu0
        %949 = vrot.lane.b32.xlu0 %v939, 96
        %v950 = vpop.permute.xlu0 %949
        %951 = vrot.lane.b32.xlu0 %v944, 96
        %v952 = vpop.permute.xlu0 %951
        %vm955 = vcmask 1048320
        %956 = vst.msk [vmem:[#allocation3] sm:$0xff] %vm955, %v950
        %957 = vst.msk [vmem:[#allocation3 + $0x10] sm:$0xff] %vm955, %v952
        %958 = vst.msk [vmem:[#allocation3 + $0x8] sm:$0xff] %vm697, %v614
        %959 = vst.msk [vmem:[#allocation3 + $0x18] sm:$0xff] %vm697, %v619
        %v960 = vld [vmem:[%s1 + $0x58] sm:$0xff]
        %v961 = vld [vmem:[%s1 + $0x60] sm:$0xff]
        %v962 = vld [vmem:[%s1 + $0x68] sm:$0xff]
        %v963 = vld [vmem:[%s1 + $0x70] sm:$0xff]
        %v964 = vld [vmem:[%s1 + $0x78] sm:$0xff]
        %v965 = vld [vmem:[%s1 + $0x80] sm:$0xff]
        %v966 = vld [vmem:[%s1 + $0x88] sm:$0xff]
        %v967 = vld [vmem:[%s1 + $0x90] sm:$0xff]
        %v968 = vld [vmem:[%s1 + $0x98] sm:$0xff]
        %v969 = vld [vmem:[%s1 + $0xa0] sm:$0xff]
        %v970 = vld [vmem:[%s1 + $0xa8] sm:$0xff]
        %v971 = vld [vmem:[%s1 + $0xb0] sm:$0xff]
        %v972 = vld [vmem:[%s1 + $0xb8] sm:$0xff]
        %v973 = vld [vmem:[%s1 + $0xc0] sm:$0xff]
        %v974 = vld [vmem:[%s1 + $0xc8] sm:$0xff]
        %v975 = vld [vmem:[%s1 + $0xd0] sm:$0xff]
        %v976 = vld [vmem:[%s1 + $0xd8] sm:$0xff]
        %v977 = vld [vmem:[%s1 + $0xe0] sm:$0xff]
        %v978 = vld [vmem:[%s1 + $0xe8] sm:$0xff]
        %v979 = vld [vmem:[%s1 + $0xf0] sm:$0xff]
        %v980 = vld [vmem:[%s1 + $0xf8] sm:$0x1]
        %v981 = vld [vmem:[#allocation3] sm:$0xff]
        %v982 = vld [vmem:[#allocation3 + $0x8] sm:$0xff]
        %v983 = vld [vmem:[#allocation3 + $0x10] sm:$0xff]
        %v984 = vld [vmem:[#allocation3 + $0x18] sm:$0xff]
        %v985 = vlaneseq
        %v986 = vshrl.u32 %v985, 7
        %v987 = vsub.s32 0, %v986
        %v988 = vrot.slane %v980, %v987
        %v990 = vsel %vm697, %v982, 0
        %v993 = vsel %vm697, %v984, 0
        %995 = vmatprep.subr.mxu0 0.0
        %996 = vmatpush1.msra.mxu0 %v975
        %997 = vmatprep.subr.mxu0 0.0
        %998 = vmatpush1.msra.mxu0 %v974
        %999 = vmatprep.subr.mxu0 0.0
        %1000 = vmatpush1.msra.mxu0 %v973
        %1001 = vmatprep.subr.mxu0 0.0
        %1002 = vmatpush1.msra.mxu0 %v972
        %1003 = vmatprep.subr.mxu0 0.0
        %1004 = vmatpush1.msra.mxu0 %v971
        %1005 = vmatprep.subr.mxu0 0.0
        %1006 = vmatpush1.msra.mxu0 %v970
        %1007 = vmatprep.subr.mxu0 0.0
        %1008 = vmatpush1.msra.mxu0 %v969
        %1009 = vmatprep.subr.mxu0 0.0
        %1010 = vmatpush1.msra.mxu0 %v968
        %1011 = vmatprep.subr.mxu0 0.0
        %1012 = vmatpush1.msra.mxu0 %v967
        %1013 = vmatprep.subr.mxu0 0.0
        %1014 = vmatpush1.msra.mxu0 %v966
        %1015 = vmatprep.subr.mxu0 0.0
        %1016 = vmatpush1.msra.mxu0 %v965
        %1017 = vmatprep.subr.mxu0 0.0
        %1018 = vmatpush1.msra.mxu0 %v964
        %1019 = vmatprep.subr.mxu0 0.0
        %1020 = vmatpush1.msra.mxu0 %v963
        %1021 = vmatprep.subr.mxu0 0.0
        %1022 = vmatpush1.msra.mxu0 %v962
        %1023 = vmatprep.subr.mxu0 0.0
        %1024 = vmatpush1.msra.mxu0 %v961
        %1025 = vmatprep.subr.mxu0 0.0
        %1026 = vmatpush1.msra.mxu0 %v960
        %1027 = vmatprep.subr.mxu0 0.0
        %1028 = vmatpush2.msra.mxu0 0.0
        %1029 = vmatprep.subr.mxu0 0.0
        %1030 = vmatpush2.msra.mxu0 0.0
        %1031 = vmatprep.subr.mxu0 0.0
        %1032 = vmatpush2.msra.mxu0 0.0
        %1033 = vmatprep.subr.mxu0 0.0
        %1034 = vmatpush2.msra.mxu0 0.0
        %1035 = vmatprep.subr.mxu0 0.0
        %1036 = vmatpush2.msra.mxu0 0.0
        %1037 = vmatprep.subr.mxu0 0.0
        %1038 = vmatpush2.msra.mxu0 0.0
        %1039 = vmatprep.subr.mxu0 0.0
        %1040 = vmatpush2.msra.mxu0 0.0
        %1041 = vmatprep.subr.mxu0 0.0
        %1042 = vmatpush2.msra.mxu0 0.0
        %1043 = vmatprep.subr.mxu0 0.0
        %1044 = vmatpush2.msra.mxu0 0.0
        %1045 = vmatprep.subr.mxu0 0.0
        %1046 = vmatpush2.msra.mxu0 0.0
        %1047 = vmatprep.subr.mxu0 0.0
        %1048 = vmatpush2.msra.mxu0 0.0
        %1049 = vmatprep.subr.mxu0 0.0
        %1050 = vmatpush2.msra.mxu0 0.0
        %1051 = vmatprep.subr.mxu0 0.0
        %1052 = vmatpush2.msra.mxu0 %v979
        %1053 = vmatprep.subr.mxu0 0.0
        %1054 = vmatpush2.msra.mxu0 %v978
        %1055 = vmatprep.subr.mxu0 0.0
        %1056 = vmatpush2.msra.mxu0 %v977
        %1057 = vmatprep.subr.mxu0 0.0
        %1058 = vmatpush2.msra.mxu0 %v976
        %1059 = vmatprep.mubr.f32.mxu0 %v990
        %1060 = vmatmul.mubr.f32.gmra.mxu0 %v981
        %v1061 = vpop.f32.mrf.mxu0
        %v1062 = vadd.f32 %v988, %v1061
        %v1063 = vpop.f32.mrf.mxu0
        %1064 = vmatprep.mubr.f32.mxu0 %v993
        %1065 = vmatmul.mubr.f32.gmra.mxu0 %v983
        %v1066 = vpop.f32.mrf.mxu0
        %v1067 = vadd.f32 %v988, %v1066
        %v1068 = vpop.f32.mrf.mxu0
        %1069 = vdwg.mxu0
        %1070 = vst.msk [vmem:[%s136] sm:$0xff] %vm152, %v1062
        %1071 = vst.msk [vmem:[%s136 + $0x8] sm:$0xff] %vm152, %v1067
        %s1072 = sand.u32 %s71, 1
        %s1073 = scalar_lea.sflag [#allocation5], %s1072
        %s1074 = sand.u32 %s71, 1
        %s1075 = smul.addr %s1074, 16
        %s1076 = scalar_lea.vmem [#allocation4], %s1075
        // Predicated region
        $region29: #{rgcn_forward.1} parent=27 // pred_check
          %p1077 = pneg %p81
        $region30: #{rgcn_forward.1} parent=27 // pred_check_branch
          %1079 = sbr.rel (%p1077) target = $region32
        $region31: #{rgcn_forward.1} parent=27 // pred_region
          %s1081 = ssub.s32 256, 256
          %1082 = vsyncadd %s1073, %s1081
          %s1083 = smul.addr %s16, 2
          %s1084 = smul.addr %s1083, 128
          %s1085 = scalar_lea.hbm %s2, %s1084
          %s1086 = sshll.u32 %s1076, 4
          %s1087 = int_to_ptr.vmem [resolvable:$true] %s1086
          %1092 = dma.vmem_to_hbm [thread:$0]  %s1087, 256, %s1085, %s1073, 128, 128, 8
        $region32: #{rgcn_forward.1} parent=27 // pred_fallthru
          _
      $region28: #{rgcn_forward.1} parent=5 // pred_fallthru
        _
      %p1093 = scmp.le.s32.totalorder 2, %s11
      // Predicated region
      $region33: #{rgcn_forward.1} parent=5 // pred_check
        %p1094 = pneg %p1093
      $region34: #{rgcn_forward.1} parent=5 // pred_check_branch
        %1096 = sbr.rel (%p1094) target = $region36
      $region35: #{rgcn_forward.1} parent=5 // pred_region
        %s1097 = ssub.s32 %s11, 2
        // Predicated region
        $region37: #{rgcn_forward.1} parent=35 // pred_check
          %p1098 = pneg %p87
        $region38: #{rgcn_forward.1} parent=35 // pred_check_branch
          %1100 = sbr.rel (%p1098) target = $region40
        $region39: #{rgcn_forward.1} parent=35 // pred_region
          %s1101 = sand.u32 %s72, 1
          %s1102 = scalar_lea.sflag [#allocation5], %s1101
          %s1103 = sand.u32 %s72, 1
          %s1104 = smul.addr %s1103, 16
          %s1105 = scalar_lea.vmem [#allocation4], %s1104
          %1106 = dma.done %s1102, 256
        $region40: #{rgcn_forward.1} parent=35 // pred_fallthru
          _
      $region36: #{rgcn_forward.1} parent=5 // pred_fallthru
        _
    $region6: #{rgcn_forward.1} parent=1 // loop_footer
      %s15 = sadd.s32 1, %s11
    $region7: #{rgcn_forward.1} parent=1 // loop_footer_branch
      %10 = sbr.rel target = $region3
    $region8: #{rgcn_forward.1} parent=1 // loop_exit
      _
    %1107 = vsyncpa [#allocation5], 1
    %s1108 = scalar_lea.sflag [#allocation5], 1
    %1109 = vsyncpa %s1108, 1

</llo_original>
